<compile_context>
chip_gen: v7x
topology: tpu7x:2x2x1
jax: 0.10.0
libtpu: 0.0.40
codegen_flags: <defaults>
</compile_context>

<pallas_src>
import jax
import jax.numpy as jnp
from jax.experimental import pallas as pl
from jax.experimental.pallas import tpu as pltpu

TS = 0.01          # Euler step used in ODEFunc.forward
HID = 100          # torch hidden width
HID_PAD = 128      # padded to one full lane tile


def _use_bf16_tanh() -> bool:
    """bf16 EUP path exists on v6e/v7x; v2-v5 would only pay convert cost."""
    try:
        kind = jax.devices()[0].device_kind.lower()
    except Exception:
        return False
    return not any(t in kind for t in ("v2", "v3", "v4", "v5"))


def _make_kernel(use_bf16_tanh: bool):
    def odefunc_kernel(xt_ref, ut_ref, w1x_ref, w1u_ref, b1_ref,
                       weff_ref, aeff_ref, ceff_ref, yt_ref):
        """One column-block of the fused forward.

        xt_ref  : (4, TM)       X^T block
        ut_ref  : (1, TM)       U^T block
        w1x_ref : (128, 4)      first-layer weights acting on X  (torch W1[:, :4], row-padded)
        w1u_ref : (128, 1)      first-layer weights acting on U  (torch W1[:, 4:5], row-padded)
        b1_ref  : (128, 1)      first-layer bias (row-padded)
        weff_ref: (4, 128)      Ts * WL @ W2  (col-padded)
        aeff_ref: (4, 4)        I + Ts * AL
        ceff_ref: (4, 1)        Ts * WL @ b2
        yt_ref  : (4, TM)       y^T block, y = X + Ts*DX for every row
        """
        Xt = xt_ref[...]                                   # (4, TM)
        Ut = ut_ref[...]                                   # (1, TM)

        # h^T = tanh(W1x @ X^T + w1u * U^T + b1)            (128, TM)
        h = jnp.dot(w1x_ref[...], Xt, preferred_element_type=jnp.float32)
        h = h + w1u_ref[...] * Ut + b1_ref[...]
        if use_bf16_tanh:
            h = jnp.tanh(h.astype(jnp.bfloat16)).astype(jnp.float32)
        else:
            h = jnp.tanh(h)

        # y^T = A_eff @ X^T + W_eff @ h^T + c_eff            (4, TM)
        yt = (jnp.dot(aeff_ref[...], Xt, preferred_element_type=jnp.float32)
              + jnp.dot(weff_ref[...], h, preferred_element_type=jnp.float32)
              + ceff_ref[...])
        yt_ref[...] = yt

    return odefunc_kernel


def odefunc_forward(X, U, params, *, tm=2048):
    """X: (N, 4) f32, U: (N, 1) f32  ->  X_pred: (N, 4) f32."""
    N = X.shape[0]
    w1x, w1u, b1, weff, aeff, ceff = params

    if N <= tm:
        # Single block: full-dim BlockSpecs, no (8,128) divisibility needed.
        TM, Np = N, N
        Xt = X.T                                           # (4, N)
        Ut = U.T                                           # (1, N)
    else:
        TM = max(128, (tm // 128) * 128)                   # lane axis tile
        Np = pl.cdiv(N, TM) * TM
        Xt = jnp.pad(X.T, ((0, 0), (0, Np - N)))
        Ut = jnp.pad(U.T, ((0, 0), (0, Np - N)))

    const2 = lambda i: (0, 0)
    kernel = _make_kernel(_use_bf16_tanh())

    yt = pl.pallas_call(
        kernel,
        out_shape=jax.ShapeDtypeStruct((4, Np), jnp.float32),
        grid=(Np // TM,),
        in_specs=[
            pl.BlockSpec((4, TM), lambda i: (0, i)),       # X^T
            pl.BlockSpec((1, TM), lambda i: (0, i)),       # U^T
            pl.BlockSpec((HID_PAD, 4), const2),            # W1x   (resident)
            pl.BlockSpec((HID_PAD, 1), const2),            # W1u   (resident)
            pl.BlockSpec((HID_PAD, 1), const2),            # b1    (resident)
            pl.BlockSpec((4, HID_PAD), const2),            # W_eff (resident)
            pl.BlockSpec((4, 4), const2),                  # A_eff (resident)
            pl.BlockSpec((4, 1), const2),                  # c_eff (resident)
        ],
        out_specs=pl.BlockSpec((4, TM), lambda i: (0, i)),
        compiler_params=pltpu.CompilerParams(
            dimension_semantics=("parallel",),
            vmem_limit_bytes=32 * 1024 * 1024,
        ),
        cost_estimate=pl.CostEstimate(
            flops=2 * Np * (HID_PAD * 4 + 4 * HID_PAD + 4 * 4),
            transcendentals=HID_PAD * Np,
            bytes_accessed=36 * Np,
        ),
    )(Xt, Ut, w1x, w1u, b1, weff, aeff, ceff)

    y = yt[:, :N].T                                        # (N, 4) = X + Ts*DX
    # Euler shift done in the wrapper (keeps kernel stores fully aligned):
    # X_pred[0] = X[0];  X_pred[1:] = y[:-1]
    return jnp.concatenate([X[0:1, :], y[:-1, :]], axis=0)


def make_raw_params(key):
    """Torch-layout weights matching ODEFunc.__init__ (deterministic synthetic)."""
    k1, k2 = jax.random.split(key)
    W1 = jax.random.normal(k1, (HID, 5), jnp.float32) * 0.001   # net[0].weight
    b1 = jnp.zeros((HID,), jnp.float32)                         # net[0].bias
    W2 = jax.random.normal(k2, (2, HID), jnp.float32) * 0.001   # net[2].weight
    b2 = jnp.zeros((2,), jnp.float32)                           # net[2].bias
    AL = jnp.array([[0.0, 1.0, 0.0, 0.0],
                    [0.0, 0.0, 0.0, 0.0],
                    [0.0, 0.0, 0.0, 1.0],
                    [0.0, 0.0, 0.0, 0.0]], jnp.float32)         # AL.weight (frozen)
    WL = jnp.array([[0.0, 0.0],
                    [1.0, 0.0],
                    [0.0, 0.0],
                    [0.0, 1.0]], jnp.float32)                   # WL.weight (frozen)
    return W1, b1, W2, b2, AL, WL


def pack_params(raw):
    """Fold/pad torch weights into the kernel's transposed, fused layout."""
    W1, b1, W2, b2, AL, WL = raw
    w1x = jnp.zeros((HID_PAD, 4), jnp.float32).at[:HID].set(W1[:, :4])
    w1u = jnp.zeros((HID_PAD, 1), jnp.float32).at[:HID].set(W1[:, 4:5])
    b1c = jnp.zeros((HID_PAD, 1), jnp.float32).at[:HID, 0].set(b1)
    weff = jnp.zeros((4, HID_PAD), jnp.float32).at[:, :HID].set(TS * (WL @ W2))
    aeff = jnp.eye(4, dtype=jnp.float32) + TS * AL
    ceff = TS * (WL @ b2.reshape(2, 1))                         # (4, 1)
    return w1x, w1u, b1c, weff, aeff, ceff


def reference_forward(X, U, raw):
    """Pure-JAX mirror of the PyTorch module (un-fused, un-padded)."""
    W1, b1, W2, b2, AL, WL = raw
    Xm, Um = X[:-1], U[:-1]
    XU = jnp.concatenate([Xm, Um], axis=1)         # (N-1, 5)
    h = jnp.tanh(XU @ W1.T + b1)
    fx = h @ W2.T + b2
    dx = fx @ WL.T + Xm @ AL.T
    return jnp.concatenate([X[0:1, :], Xm + TS * dx], axis=0)


if __name__ == "__main__":
    key = jax.random.PRNGKey(0)
    kp, kx, ku = jax.random.split(key, 3)
    raw = make_raw_params(kp)
    params = pack_params(raw)

    # Case 1: small trajectory -> single full-dim block.
    N1 = 8
    X1 = jax.random.normal(kx, (N1, 4), jnp.float32)
    U1 = jax.random.normal(ku, (N1, 1), jnp.float32)
    out1 = jax.block_until_ready(odefunc_forward(X1, U1, params))
    ref1 = reference_forward(X1, U1, raw)
    assert out1.shape == (N1, 4) and out1.dtype == jnp.float32
    assert jnp.allclose(out1, ref1, atol=1e-5, rtol=1e-5), "mismatch (single block)"

    # Case 2: longer trajectory -> exercises the gridded / lane-padded path.
    N2 = 300
    kx2, ku2 = jax.random.split(kx)
    X2 = jax.random.normal(kx2, (N2, 4), jnp.float32)
    U2 = jax.random.normal(ku2, (N2, 1), jnp.float32)
    out2 = jax.block_until_ready(odefunc_forward(X2, U2, params, tm=128))
    ref2 = reference_forward(X2, U2, raw)
    assert out2.shape == (N2, 4) and out2.dtype == jnp.float32
    assert jnp.allclose(out2, ref2, atol=1e-5, rtol=1e-5), "mismatch (gridded)"

    print("KERNEL_OK")
</pallas_src>

<mosaic_0001>
module attributes {stable_mosaic.version = 11 : i64} {
  func.func @odefunc_kernel(%arg0: i32, %arg1: memref<4x8xf32, #tpu.memory_space<vmem>>, %arg2: memref<1x8xf32, #tpu.memory_space<vmem>>, %arg3: memref<128x4xf32, #tpu.memory_space<vmem>>, %arg4: memref<128x1xf32, #tpu.memory_space<vmem>>, %arg5: memref<128x1xf32, #tpu.memory_space<vmem>>, %arg6: memref<4x128xf32, #tpu.memory_space<vmem>>, %arg7: memref<4x4xf32, #tpu.memory_space<vmem>>, %arg8: memref<4x1xf32, #tpu.memory_space<vmem>>, %arg9: memref<4x8xf32, #tpu.memory_space<vmem>>) attributes {dimension_semantics = [#tpu.dimension_semantics<parallel>], iteration_bounds = array<i64: 1>, scalar_prefetch = 0 : i64, scratch_operands = 0 : i64, tpu.core_type = #tpu.core_type<tc>, window_params = [{transform_indices = @transform_0, window_bounds = array<i64: 4, 8>}, {transform_indices = @transform_1, window_bounds = array<i64: 1, 8>}, {pipeline_mode = #tpu.pipeline_mode<synchronous>, transform_indices = @transform_2, window_bounds = array<i64: 128, 4>}, {pipeline_mode = #tpu.pipeline_mode<synchronous>, transform_indices = @transform_3, window_bounds = array<i64: 128, 1>}, {pipeline_mode = #tpu.pipeline_mode<synchronous>, transform_indices = @transform_4, window_bounds = array<i64: 128, 1>}, {pipeline_mode = #tpu.pipeline_mode<synchronous>, transform_indices = @transform_5, window_bounds = array<i64: 4, 128>}, {pipeline_mode = #tpu.pipeline_mode<synchronous>, transform_indices = @transform_6, window_bounds = array<i64: 4, 4>}, {pipeline_mode = #tpu.pipeline_mode<synchronous>, transform_indices = @transform_7, window_bounds = array<i64: 4, 1>}, {transform_indices = @transform_8, window_bounds = array<i64: 4, 8>}]} {
    %c0 = arith.constant 0 : index
    %c0_0 = arith.constant 0 : index
    %0 = vector.load %arg1[%c0, %c0_0] : memref<4x8xf32, #tpu.memory_space<vmem>>, vector<4x8xf32>
    %c0_1 = arith.constant 0 : index
    %c0_2 = arith.constant 0 : index
    %1 = vector.load %arg2[%c0_1, %c0_2] : memref<1x8xf32, #tpu.memory_space<vmem>>, vector<1x8xf32>
    %c0_3 = arith.constant 0 : index
    %c0_4 = arith.constant 0 : index
    %2 = vector.load %arg3[%c0_3, %c0_4] : memref<128x4xf32, #tpu.memory_space<vmem>>, vector<128x4xf32>
    %cst = arith.constant dense<0.000000e+00> : vector<128x8xf32>
    %3 = tpu.matmul %2, %0, %cst {dimension_numbers = #tpu.dot_dimension_numbers<[1], [0], [0], [1], [0, 0, 1, 1], [], []>} : vector<128x4xf32>, vector<4x8xf32>, vector<128x8xf32> -> vector<128x8xf32>
    %c0_5 = arith.constant 0 : index
    %c0_6 = arith.constant 0 : index
    %4 = vector.load %arg4[%c0_5, %c0_6] : memref<128x1xf32, #tpu.memory_space<vmem>>, vector<128x1xf32>
    %5 = vector.broadcast %4 : vector<128x1xf32> to vector<128x8xf32>
    %6 = vector.broadcast %1 : vector<1x8xf32> to vector<128x8xf32>
    %7 = arith.mulf %5, %6 : vector<128x8xf32>
    %8 = arith.addf %3, %7 : vector<128x8xf32>
    %c0_7 = arith.constant 0 : index
    %c0_8 = arith.constant 0 : index
    %9 = vector.load %arg5[%c0_7, %c0_8] : memref<128x1xf32, #tpu.memory_space<vmem>>, vector<128x1xf32>
    %10 = vector.broadcast %9 : vector<128x1xf32> to vector<128x8xf32>
    %11 = arith.addf %8, %10 : vector<128x8xf32>
    %12 = arith.truncf %11 : vector<128x8xf32> to vector<128x8xbf16>
    %13 = math.tanh %12 : vector<128x8xbf16>
    %14 = arith.extf %13 : vector<128x8xbf16> to vector<128x8xf32>
    %c0_9 = arith.constant 0 : index
    %c0_10 = arith.constant 0 : index
    %15 = vector.load %arg7[%c0_9, %c0_10] : memref<4x4xf32, #tpu.memory_space<vmem>>, vector<4x4xf32>
    %cst_11 = arith.constant dense<0.000000e+00> : vector<4x8xf32>
    %16 = tpu.matmul %15, %0, %cst_11 {dimension_numbers = #tpu.dot_dimension_numbers<[1], [0], [0], [1], [0, 0, 1, 1], [], []>} : vector<4x4xf32>, vector<4x8xf32>, vector<4x8xf32> -> vector<4x8xf32>
    %c0_12 = arith.constant 0 : index
    %c0_13 = arith.constant 0 : index
    %17 = vector.load %arg6[%c0_12, %c0_13] : memref<4x128xf32, #tpu.memory_space<vmem>>, vector<4x128xf32>
    %cst_14 = arith.constant dense<0.000000e+00> : vector<4x8xf32>
    %18 = tpu.matmul %17, %14, %cst_14 {dimension_numbers = #tpu.dot_dimension_numbers<[1], [0], [0], [1], [0, 0, 1, 1], [], []>} : vector<4x128xf32>, vector<128x8xf32>, vector<4x8xf32> -> vector<4x8xf32>
    %19 = arith.addf %16, %18 : vector<4x8xf32>
    %c0_15 = arith.constant 0 : index
    %c0_16 = arith.constant 0 : index
    %20 = vector.load %arg8[%c0_15, %c0_16] : memref<4x1xf32, #tpu.memory_space<vmem>>, vector<4x1xf32>
    %21 = vector.broadcast %20 : vector<4x1xf32> to vector<4x8xf32>
    %22 = arith.addf %19, %21 : vector<4x8xf32>
    %c0_17 = arith.constant 0 : index
    %c0_18 = arith.constant 0 : index
    %23 = vector.load %arg9[%c0_17, %c0_18] : memref<4x8xf32, #tpu.memory_space<vmem>>, vector<4x8xf32>
    tpu.vector_store %arg9[%c0_17, %c0_18], %22 {strides = array<i32>} : memref<4x8xf32, #tpu.memory_space<vmem>>, vector<4x8xf32>,
    return
  }
  func.func @transform_0(%arg0: i32) -> (i32, i32) {
    %c0_i32 = arith.constant 0 : i32
    %c0_i32_0 = arith.constant 0 : i32
    return %c0_i32, %arg0 : i32, i32
  }
  func.func @transform_1(%arg0: i32) -> (i32, i32) {
    %c0_i32 = arith.constant 0 : i32
    %c0_i32_0 = arith.constant 0 : i32
    return %c0_i32, %arg0 : i32, i32
  }
  func.func @transform_2(%arg0: i32) -> (i32, i32) {
    %c0_i32 = arith.constant 0 : i32
    %c0_i32_0 = arith.constant 0 : i32
    %c0_i32_1 = arith.constant 0 : i32
    return %c0_i32, %c0_i32_0 : i32, i32
  }
  func.func @transform_3(%arg0: i32) -> (i32, i32) {
    %c0_i32 = arith.constant 0 : i32
    %c0_i32_0 = arith.constant 0 : i32
    %c0_i32_1 = arith.constant 0 : i32
    return %c0_i32, %c0_i32_0 : i32, i32
  }
  func.func @transform_4(%arg0: i32) -> (i32, i32) {
    %c0_i32 = arith.constant 0 : i32
    %c0_i32_0 = arith.constant 0 : i32
    %c0_i32_1 = arith.constant 0 : i32
    return %c0_i32, %c0_i32_0 : i32, i32
  }
  func.func @transform_5(%arg0: i32) -> (i32, i32) {
    %c0_i32 = arith.constant 0 : i32
    %c0_i32_0 = arith.constant 0 : i32
    %c0_i32_1 = arith.constant 0 : i32
    return %c0_i32, %c0_i32_0 : i32, i32
  }
  func.func @transform_6(%arg0: i32) -> (i32, i32) {
    %c0_i32 = arith.constant 0 : i32
    %c0_i32_0 = arith.constant 0 : i32
    %c0_i32_1 = arith.constant 0 : i32
    return %c0_i32, %c0_i32_0 : i32, i32
  }
  func.func @transform_7(%arg0: i32) -> (i32, i32) {
    %c0_i32 = arith.constant 0 : i32
    %c0_i32_0 = arith.constant 0 : i32
    %c0_i32_1 = arith.constant 0 : i32
    return %c0_i32, %c0_i32_0 : i32, i32
  }
  func.func @transform_8(%arg0: i32) -> (i32, i32) {
    %c0_i32 = arith.constant 0 : i32
    %c0_i32_0 = arith.constant 0 : i32
    return %c0_i32, %arg0 : i32, i32
  }
}

</mosaic_0001>

<llo_original>
// kernel: tpu_custom_call.1
$region0: #{tpu_custom_call.1}
  #allocation0 [shape = 'u32[]', space=smem, size = 0x4, offset = 0x4, fixed_abs, tag = 'smem constant byte address 0x4 - core index']
  #allocation1 [shape = 'u32[144,128]{1,0:T(1,128)}', space=vmem, size = 0x12000, scoped, tag = 'internal scratch']
  %s0 = inlined_call_operand.vmem [shape: f32[4,8], index: 0, kind: input, shape index: {}]
  %s1 = inlined_call_operand.vmem [shape: f32[1,8], index: 1, kind: input, shape index: {}]
  %s2 = inlined_call_operand.vmem [shape: f32[128,4], index: 2, kind: input, shape index: {}]
  %s3 = inlined_call_operand.vmem [shape: f32[128,1], index: 3, kind: input, shape index: {}]
  %s4 = inlined_call_operand.vmem [shape: f32[128,1], index: 4, kind: input, shape index: {}]
  %s5 = inlined_call_operand.vmem [shape: f32[4,128], index: 5, kind: input, shape index: {}]
  %s6 = inlined_call_operand.vmem [shape: f32[4,4], index: 6, kind: input, shape index: {}]
  %s7 = inlined_call_operand.vmem [shape: f32[4,1], index: 7, kind: input, shape index: {}]
  %s8 = inlined_call_operand.hbm [shape: f32[4,8], index: 8, kind: output, shape index: {}]
  %s9 = sld [smem:[#allocation0]]
  $region42: #{tpu_custom_call.1} parent=0
    _
  %s11 = ssub.s32 1, %s9
  %s12 = scalar_select 0, %s11, %s9
  $region1: #{tpu_custom_call.1} parent=0
    #allocation2 [shape = 'u8[2048]{0}', space=vmem, size = 0x800, scoped, tag = 'output window, operand 0, single buffered']
    #allocation3 [shape = 's32[1]{0}', space=sflag, size = 0x4, scoped, tag = 'scoped memory for tpu_custom_call.1']
    %13 = vsyncpa [#allocation3], 0
    // Predicated region
    $region2: #{tpu_custom_call.1} parent=1 // pred_check
      _
    $region3: #{tpu_custom_call.1} parent=1 // pred_check_branch
      %15 = sbr.rel (0) target = $region5
    $region4: #{tpu_custom_call.1} parent=1 // pred_region
      _
    $region5: #{tpu_custom_call.1} parent=1 // pred_fallthru
      _
    // Predicated region
    $region6: #{tpu_custom_call.1} parent=1 // pred_check
      _
    $region7: #{tpu_custom_call.1} parent=1 // pred_check_branch
      %17 = sbr.rel (0) target = $region9
    $region8: #{tpu_custom_call.1} parent=1 // pred_region
      _
    $region9: #{tpu_custom_call.1} parent=1 // pred_fallthru
      _
    // Predicated region
    $region10: #{tpu_custom_call.1} parent=1 // pred_check
      _
    $region11: #{tpu_custom_call.1} parent=1 // pred_check_branch
      %19 = sbr.rel (0) target = $region13
    $region12: #{tpu_custom_call.1} parent=1 // pred_region
      _
    $region13: #{tpu_custom_call.1} parent=1 // pred_fallthru
      _
    // Predicated region
    $region14: #{tpu_custom_call.1} parent=1 // pred_check
      _
    $region15: #{tpu_custom_call.1} parent=1 // pred_check_branch
      %21 = sbr.rel (0) target = $region17
    $region16: #{tpu_custom_call.1} parent=1 // pred_region
      _
    $region17: #{tpu_custom_call.1} parent=1 // pred_fallthru
      _
    // Predicated region
    $region18: #{tpu_custom_call.1} parent=1 // pred_check
      _
    $region19: #{tpu_custom_call.1} parent=1 // pred_check_branch
      %23 = sbr.rel (0) target = $region21
    $region20: #{tpu_custom_call.1} parent=1 // pred_region
      _
    $region21: #{tpu_custom_call.1} parent=1 // pred_fallthru
      _
    // Predicated region
    $region22: #{tpu_custom_call.1} parent=1 // pred_check
      _
    $region23: #{tpu_custom_call.1} parent=1 // pred_check_branch
      %25 = sbr.rel (0) target = $region25
    $region24: #{tpu_custom_call.1} parent=1 // pred_region
      _
    $region25: #{tpu_custom_call.1} parent=1 // pred_fallthru
      _
    // Predicated region
    $region26: #{tpu_custom_call.1} parent=1 // pred_check
      _
    $region27: #{tpu_custom_call.1} parent=1 // pred_check_branch
      %27 = sbr.rel (0) target = $region29
    $region28: #{tpu_custom_call.1} parent=1 // pred_region
      _
    $region29: #{tpu_custom_call.1} parent=1 // pred_fallthru
      _
    // Predicated region
    $region30: #{tpu_custom_call.1} parent=1 // pred_check
      _
    $region31: #{tpu_custom_call.1} parent=1 // pred_check_branch
      %29 = sbr.rel (0) target = $region33
    $region32: #{tpu_custom_call.1} parent=1 // pred_region
      _
    $region33: #{tpu_custom_call.1} parent=1 // pred_fallthru
      _
    %v30 = vld [vmem:[%s0] sm:$0xf]
    %v31 = vld [vmem:[%s1] sm:$0x1]
    %v32 = vld [vmem:[%s2] sm:$0xff]
    %v33 = vld [vmem:[%s2 + $0x8] sm:$0xff]
    %v34 = vld [vmem:[%s2 + $0x10] sm:$0xff]
    %v35 = vld [vmem:[%s2 + $0x18] sm:$0xff]
    %v36 = vld [vmem:[%s2 + $0x20] sm:$0xff]
    %v37 = vld [vmem:[%s2 + $0x28] sm:$0xff]
    %v38 = vld [vmem:[%s2 + $0x30] sm:$0xff]
    %v39 = vld [vmem:[%s2 + $0x38] sm:$0xff]
    %v40 = vld [vmem:[%s2 + $0x40] sm:$0xff]
    %v41 = vld [vmem:[%s2 + $0x48] sm:$0xff]
    %v42 = vld [vmem:[%s2 + $0x50] sm:$0xff]
    %v43 = vld [vmem:[%s2 + $0x58] sm:$0xff]
    %v44 = vld [vmem:[%s2 + $0x60] sm:$0xff]
    %v45 = vld [vmem:[%s2 + $0x68] sm:$0xff]
    %v46 = vld [vmem:[%s2 + $0x70] sm:$0xff]
    %v47 = vld [vmem:[%s2 + $0x78] sm:$0xff]
    %v48 = vld [vmem:[%s3] sm:$0xff]
    %v49 = vld [vmem:[%s3 + $0x8] sm:$0xff]
    %v50 = vld [vmem:[%s3 + $0x10] sm:$0xff]
    %v51 = vld [vmem:[%s3 + $0x18] sm:$0xff]
    %v52 = vld [vmem:[%s3 + $0x20] sm:$0xff]
    %v53 = vld [vmem:[%s3 + $0x28] sm:$0xff]
    %v54 = vld [vmem:[%s3 + $0x30] sm:$0xff]
    %v55 = vld [vmem:[%s3 + $0x38] sm:$0xff]
    %v56 = vld [vmem:[%s3 + $0x40] sm:$0xff]
    %v57 = vld [vmem:[%s3 + $0x48] sm:$0xff]
    %v58 = vld [vmem:[%s3 + $0x50] sm:$0xff]
    %v59 = vld [vmem:[%s3 + $0x58] sm:$0xff]
    %v60 = vld [vmem:[%s3 + $0x60] sm:$0xff]
    %v61 = vld [vmem:[%s3 + $0x68] sm:$0xff]
    %v62 = vld [vmem:[%s3 + $0x70] sm:$0xff]
    %v63 = vld [vmem:[%s3 + $0x78] sm:$0xff]
    %65 = vset.pattern.permute.xlu0 0
    %66 = vperm.xlu0 %65, %v48
    %v67 = vpop.permute.xlu0 %66
    %70 = vset.pattern.permute.xlu0 0
    %71 = vperm.xlu0 %70, %v49
    %v72 = vpop.permute.xlu0 %71
    %75 = vset.pattern.permute.xlu0 0
    %76 = vperm.xlu0 %75, %v50
    %v77 = vpop.permute.xlu0 %76
    %80 = vset.pattern.permute.xlu0 0
    %81 = vperm.xlu0 %80, %v51
    %v82 = vpop.permute.xlu0 %81
    %85 = vset.pattern.permute.xlu0 0
    %86 = vperm.xlu0 %85, %v52
    %v87 = vpop.permute.xlu0 %86
    %90 = vset.pattern.permute.xlu0 0
    %91 = vperm.xlu0 %90, %v53
    %v92 = vpop.permute.xlu0 %91
    %95 = vset.pattern.permute.xlu0 0
    %96 = vperm.xlu0 %95, %v54
    %v97 = vpop.permute.xlu0 %96
    %100 = vset.pattern.permute.xlu0 0
    %101 = vperm.xlu0 %100, %v55
    %v102 = vpop.permute.xlu0 %101
    %105 = vset.pattern.permute.xlu0 0
    %106 = vperm.xlu0 %105, %v56
    %v107 = vpop.permute.xlu0 %106
    %110 = vset.pattern.permute.xlu0 0
    %111 = vperm.xlu0 %110, %v57
    %v112 = vpop.permute.xlu0 %111
    %115 = vset.pattern.permute.xlu0 0
    %116 = vperm.xlu0 %115, %v58
    %v117 = vpop.permute.xlu0 %116
    %120 = vset.pattern.permute.xlu0 0
    %121 = vperm.xlu0 %120, %v59
    %v122 = vpop.permute.xlu0 %121
    %125 = vset.pattern.permute.xlu0 0
    %126 = vperm.xlu0 %125, %v60
    %v127 = vpop.permute.xlu0 %126
    %130 = vset.pattern.permute.xlu0 0
    %131 = vperm.xlu0 %130, %v61
    %v132 = vpop.permute.xlu0 %131
    %135 = vset.pattern.permute.xlu0 0
    %136 = vperm.xlu0 %135, %v62
    %v137 = vpop.permute.xlu0 %136
    %140 = vset.pattern.permute.xlu0 0
    %141 = vperm.xlu0 %140, %v63
    %v142 = vpop.permute.xlu0 %141
    %v145 = vlaneseq
    %v146 = vshrl.u32 %v145, 7
    %v147 = vsub.s32 0, %v146
    %v148 = vrot.slane %v31, %v147
    %v150 = vmul.f32 %v67, %v148
    %v151 = vmul.f32 %v72, %v148
    %v152 = vmul.f32 %v77, %v148
    %v153 = vmul.f32 %v82, %v148
    %v154 = vmul.f32 %v87, %v148
    %v155 = vmul.f32 %v92, %v148
    %v156 = vmul.f32 %v97, %v148
    %v157 = vmul.f32 %v102, %v148
    %v158 = vmul.f32 %v107, %v148
    %v159 = vmul.f32 %v112, %v148
    %v160 = vmul.f32 %v117, %v148
    %v161 = vmul.f32 %v122, %v148
    %v162 = vmul.f32 %v127, %v148
    %v163 = vmul.f32 %v132, %v148
    %v164 = vmul.f32 %v137, %v148
    %v165 = vmul.f32 %v142, %v148
    %vm166 = vcmask 31744
    %v168 = vsel %vm166, %v32, 0
    %v171 = vsel %vm166, %v33, 0
    %v174 = vsel %vm166, %v34, 0
    %v177 = vsel %vm166, %v35, 0
    %v180 = vsel %vm166, %v36, 0
    %v183 = vsel %vm166, %v37, 0
    %v186 = vsel %vm166, %v38, 0
    %v189 = vsel %vm166, %v39, 0
    %v192 = vsel %vm166, %v40, 0
    %v195 = vsel %vm166, %v41, 0
    %v198 = vsel %vm166, %v42, 0
    %v201 = vsel %vm166, %v43, 0
    %v204 = vsel %vm166, %v44, 0
    %v207 = vsel %vm166, %v45, 0
    %v210 = vsel %vm166, %v46, 0
    %v213 = vsel %vm166, %v47, 0
    %vm215 = vcmask 1043456
    %v217 = vsel %vm215, %v30, 0
    %219 = vmatprep.subr.mxu0 0.0
    %220 = vmatpush1.msra.mxu0 %v217
    %221 = vmatprep.subr.mxu0 0.0
    %222 = vmatpush1.msra.mxu0 0.0
    %223 = vmatprep.subr.mxu0 0.0
    %224 = vmatpush1.msra.mxu0 0.0
    %225 = vmatprep.subr.mxu0 0.0
    %226 = vmatpush1.msra.mxu0 0.0
    %227 = vmatprep.subr.mxu0 0.0
    %228 = vmatpush1.msra.mxu0 0.0
    %229 = vmatprep.subr.mxu0 0.0
    %230 = vmatpush1.msra.mxu0 0.0
    %231 = vmatprep.subr.mxu0 0.0
    %232 = vmatpush1.msra.mxu0 0.0
    %233 = vmatprep.subr.mxu0 0.0
    %234 = vmatpush1.msra.mxu0 0.0
    %235 = vmatprep.subr.mxu0 0.0
    %236 = vmatpush1.msra.mxu0 0.0
    %237 = vmatprep.subr.mxu0 0.0
    %238 = vmatpush1.msra.mxu0 0.0
    %239 = vmatprep.subr.mxu0 0.0
    %240 = vmatpush1.msra.mxu0 0.0
    %241 = vmatprep.subr.mxu0 0.0
    %242 = vmatpush1.msra.mxu0 0.0
    %243 = vmatprep.subr.mxu0 0.0
    %244 = vmatpush1.msra.mxu0 0.0
    %245 = vmatprep.subr.mxu0 0.0
    %246 = vmatpush1.msra.mxu0 0.0
    %247 = vmatprep.subr.mxu0 0.0
    %248 = vmatpush1.msra.mxu0 0.0
    %249 = vmatprep.subr.mxu0 0.0
    %250 = vmatpush1.msra.mxu0 0.0
    %251 = vmatprep.subr.mxu0 0.0
    %252 = vmatpush1.msra.mxu0 0.0
    %253 = vmatprep.subr.mxu0 0.0
    %254 = vmatpush1.msra.mxu0 0.0
    %255 = vmatprep.subr.mxu0 0.0
    %256 = vmatpush1.msra.mxu0 0.0
    %257 = vmatprep.subr.mxu0 0.0
    %258 = vmatpush1.msra.mxu0 0.0
    %259 = vmatprep.subr.mxu0 0.0
    %260 = vmatpush1.msra.mxu0 0.0
    %261 = vmatprep.subr.mxu0 0.0
    %262 = vmatpush1.msra.mxu0 0.0
    %263 = vmatprep.subr.mxu0 0.0
    %264 = vmatpush1.msra.mxu0 0.0
    %265 = vmatprep.subr.mxu0 0.0
    %266 = vmatpush1.msra.mxu0 0.0
    %267 = vmatprep.subr.mxu0 0.0
    %268 = vmatpush1.msra.mxu0 0.0
    %269 = vmatprep.subr.mxu0 0.0
    %270 = vmatpush1.msra.mxu0 0.0
    %271 = vmatprep.subr.mxu0 0.0
    %272 = vmatpush1.msra.mxu0 0.0
    %273 = vmatprep.subr.mxu0 0.0
    %274 = vmatpush1.msra.mxu0 0.0
    %275 = vmatprep.subr.mxu0 0.0
    %276 = vmatpush1.msra.mxu0 0.0
    %277 = vmatprep.subr.mxu0 0.0
    %278 = vmatpush1.msra.mxu0 0.0
    %279 = vmatprep.subr.mxu0 0.0
    %280 = vmatpush1.msra.mxu0 0.0
    %281 = vmatprep.subr.mxu0 0.0
    %282 = vmatpush1.msra.mxu0 0.0
    %283 = vmatprep.mubr.f32.mxu0 0.0
    %284 = vmatmul.mubr.f32.gmra.mrb[0].mxu0 %v168
    %v285 = vpop.f32.mrb[0].mxu0
    %v286 = vadd.f32 %v150, %v285
    %v287 = vpop.f32.mrb[0].mxu0
    %288 = vmatprep.mubr.f32.mxu0 0.0
    %289 = vmatmul.mubr.f32.gmra.mrb[0].mxu0 %v171
    %v290 = vpop.f32.mrb[0].mxu0
    %v291 = vadd.f32 %v151, %v290
    %v292 = vpop.f32.mrb[0].mxu0
    %293 = vmatprep.mubr.f32.mxu0 0.0
    %294 = vmatmul.mubr.f32.gmra.mrb[0].mxu0 %v174
    %v295 = vpop.f32.mrb[0].mxu0
    %v296 = vadd.f32 %v152, %v295
    %v297 = vpop.f32.mrb[0].mxu0
    %298 = vmatprep.mubr.f32.mxu0 0.0
    %299 = vmatmul.mubr.f32.gmra.mrb[0].mxu0 %v177
    %v300 = vpop.f32.mrb[0].mxu0
    %v301 = vadd.f32 %v153, %v300
    %v302 = vpop.f32.mrb[0].mxu0
    %303 = vmatprep.mubr.f32.mxu0 0.0
    %304 = vmatmul.mubr.f32.gmra.mrb[0].mxu0 %v180
    %v305 = vpop.f32.mrb[0].mxu0
    %v306 = vadd.f32 %v154, %v305
    %v307 = vpop.f32.mrb[0].mxu0
    %308 = vmatprep.mubr.f32.mxu0 0.0
    %309 = vmatmul.mubr.f32.gmra.mrb[0].mxu0 %v183
    %v310 = vpop.f32.mrb[0].mxu0
    %v311 = vadd.f32 %v155, %v310
    %v312 = vpop.f32.mrb[0].mxu0
    %313 = vmatprep.mubr.f32.mxu0 0.0
    %314 = vmatmul.mubr.f32.gmra.mrb[0].mxu0 %v186
    %v315 = vpop.f32.mrb[0].mxu0
    %v316 = vadd.f32 %v156, %v315
    %v317 = vpop.f32.mrb[0].mxu0
    %318 = vmatprep.mubr.f32.mxu0 0.0
    %319 = vmatmul.mubr.f32.gmra.mrb[0].mxu0 %v189
    %v320 = vpop.f32.mrb[0].mxu0
    %v321 = vadd.f32 %v157, %v320
    %v322 = vpop.f32.mrb[0].mxu0
    %323 = vmatprep.mubr.f32.mxu0 0.0
    %324 = vmatmul.mubr.f32.gmra.mrb[0].mxu0 %v192
    %v325 = vpop.f32.mrb[0].mxu0
    %v326 = vadd.f32 %v158, %v325
    %v327 = vpop.f32.mrb[0].mxu0
    %328 = vmatprep.mubr.f32.mxu0 0.0
    %329 = vmatmul.mubr.f32.gmra.mrb[0].mxu0 %v195
    %v330 = vpop.f32.mrb[0].mxu0
    %v331 = vadd.f32 %v159, %v330
    %v332 = vpop.f32.mrb[0].mxu0
    %333 = vmatprep.mubr.f32.mxu0 0.0
    %334 = vmatmul.mubr.f32.gmra.mrb[0].mxu0 %v198
    %v335 = vpop.f32.mrb[0].mxu0
    %v336 = vadd.f32 %v160, %v335
    %v337 = vpop.f32.mrb[0].mxu0
    %338 = vmatprep.mubr.f32.mxu0 0.0
    %339 = vmatmul.mubr.f32.gmra.mrb[0].mxu0 %v201
    %v340 = vpop.f32.mrb[0].mxu0
    %v341 = vadd.f32 %v161, %v340
    %v342 = vpop.f32.mrb[0].mxu0
    %343 = vmatprep.mubr.f32.mxu0 0.0
    %344 = vmatmul.mubr.f32.gmra.mrb[0].mxu0 %v204
    %v345 = vpop.f32.mrb[0].mxu0
    %v346 = vadd.f32 %v162, %v345
    %v347 = vpop.f32.mrb[0].mxu0
    %348 = vmatprep.mubr.f32.mxu0 0.0
    %349 = vmatmul.mubr.f32.gmra.mrb[0].mxu0 %v207
    %v350 = vpop.f32.mrb[0].mxu0
    %v351 = vadd.f32 %v163, %v350
    %v352 = vpop.f32.mrb[0].mxu0
    %353 = vmatprep.mubr.f32.mxu0 0.0
    %354 = vmatmul.mubr.f32.gmra.mrb[0].mxu0 %v210
    %v355 = vpop.f32.mrb[0].mxu0
    %v356 = vadd.f32 %v164, %v355
    %v357 = vpop.f32.mrb[0].mxu0
    %358 = vmatprep.mubr.f32.mxu0 0.0
    %359 = vmatmul.mubr.f32.gmra.mrb[0].mxu0 %v213
    %v360 = vpop.f32.mrb[0].mxu0
    %v361 = vadd.f32 %v165, %v360
    %v362 = vpop.f32.mrb[0].mxu0
    %363 = vdwg.mxu0
    %v364 = vld [vmem:[%s4] sm:$0xff]
    %v365 = vld [vmem:[%s4 + $0x8] sm:$0xff]
    %v366 = vld [vmem:[%s4 + $0x10] sm:$0xff]
    %v367 = vld [vmem:[%s4 + $0x18] sm:$0xff]
    %v368 = vld [vmem:[%s4 + $0x20] sm:$0xff]
    %v369 = vld [vmem:[%s4 + $0x28] sm:$0xff]
    %v370 = vld [vmem:[%s4 + $0x30] sm:$0xff]
    %v371 = vld [vmem:[%s4 + $0x38] sm:$0xff]
    %v372 = vld [vmem:[%s4 + $0x40] sm:$0xff]
    %v373 = vld [vmem:[%s4 + $0x48] sm:$0xff]
    %v374 = vld [vmem:[%s4 + $0x50] sm:$0xff]
    %v375 = vld [vmem:[%s4 + $0x58] sm:$0xff]
    %v376 = vld [vmem:[%s4 + $0x60] sm:$0xff]
    %v377 = vld [vmem:[%s4 + $0x68] sm:$0xff]
    %v378 = vld [vmem:[%s4 + $0x70] sm:$0xff]
    %v379 = vld [vmem:[%s4 + $0x78] sm:$0xff]
    %381 = vset.pattern.permute.xlu0 0
    %382 = vperm.xlu0 %381, %v364
    %v383 = vpop.permute.xlu0 %382
    %386 = vset.pattern.permute.xlu0 0
    %387 = vperm.xlu0 %386, %v365
    %v388 = vpop.permute.xlu0 %387
    %391 = vset.pattern.permute.xlu0 0
    %392 = vperm.xlu0 %391, %v366
    %v393 = vpop.permute.xlu0 %392
    %396 = vset.pattern.permute.xlu0 0
    %397 = vperm.xlu0 %396, %v367
    %v398 = vpop.permute.xlu0 %397
    %401 = vset.pattern.permute.xlu0 0
    %402 = vperm.xlu0 %401, %v368
    %v403 = vpop.permute.xlu0 %402
    %406 = vset.pattern.permute.xlu0 0
    %407 = vperm.xlu0 %406, %v369
    %v408 = vpop.permute.xlu0 %407
    %411 = vset.pattern.permute.xlu0 0
    %412 = vperm.xlu0 %411, %v370
    %v413 = vpop.permute.xlu0 %412
    %416 = vset.pattern.permute.xlu0 0
    %417 = vperm.xlu0 %416, %v371
    %v418 = vpop.permute.xlu0 %417
    %421 = vset.pattern.permute.xlu0 0
    %422 = vperm.xlu0 %421, %v372
    %v423 = vpop.permute.xlu0 %422
    %426 = vset.pattern.permute.xlu0 0
    %427 = vperm.xlu0 %426, %v373
    %v428 = vpop.permute.xlu0 %427
    %431 = vset.pattern.permute.xlu0 0
    %432 = vperm.xlu0 %431, %v374
    %v433 = vpop.permute.xlu0 %432
    %436 = vset.pattern.permute.xlu0 0
    %437 = vperm.xlu0 %436, %v375
    %v438 = vpop.permute.xlu0 %437
    %441 = vset.pattern.permute.xlu0 0
    %442 = vperm.xlu0 %441, %v376
    %v443 = vpop.permute.xlu0 %442
    %446 = vset.pattern.permute.xlu0 0
    %447 = vperm.xlu0 %446, %v377
    %v448 = vpop.permute.xlu0 %447
    %451 = vset.pattern.permute.xlu0 0
    %452 = vperm.xlu0 %451, %v378
    %v453 = vpop.permute.xlu0 %452
    %456 = vset.pattern.permute.xlu0 0
    %457 = vperm.xlu0 %456, %v379
    %v458 = vpop.permute.xlu0 %457
    %v460 = vadd.f32 %v286, %v383
    %v461 = vadd.f32 %v291, %v388
    %v462 = vadd.f32 %v296, %v393
    %v463 = vadd.f32 %v301, %v398
    %v464 = vadd.f32 %v306, %v403
    %v465 = vadd.f32 %v311, %v408
    %v466 = vadd.f32 %v316, %v413
    %v467 = vadd.f32 %v321, %v418
    %v468 = vadd.f32 %v326, %v423
    %v469 = vadd.f32 %v331, %v428
    %v470 = vadd.f32 %v336, %v433
    %v471 = vadd.f32 %v341, %v438
    %v472 = vadd.f32 %v346, %v443
    %v473 = vadd.f32 %v351, %v448
    %v474 = vadd.f32 %v356, %v453
    %v475 = vadd.f32 %v361, %v458
    %v476 = vpack.c.bf16 %v461, %v460
    %v477 = vpack.c.bf16 %v463, %v462
    %v478 = vpack.c.bf16 %v465, %v464
    %v479 = vpack.c.bf16 %v467, %v466
    %v480 = vpack.c.bf16 %v469, %v468
    %v481 = vpack.c.bf16 %v471, %v470
    %v482 = vpack.c.bf16 %v473, %v472
    %v483 = vpack.c.bf16 %v475, %v474
    %v484 = vtanh.bf16.pop %v476
    %v485 = vtanh.bf16.pop %v477
    %v486 = vtanh.bf16.pop %v478
    %v487 = vtanh.bf16.pop %v479
    %v488 = vtanh.bf16.pop %v480
    %v489 = vtanh.bf16.pop %v481
    %v490 = vtanh.bf16.pop %v482
    %v491 = vtanh.bf16.pop %v483
    %v492 = vunpack.c.l.bf16 %v484
    %v493 = vunpack.c.h.bf16 %v484
    %v494 = vunpack.c.l.bf16 %v485
    %v495 = vunpack.c.h.bf16 %v485
    %v496 = vunpack.c.l.bf16 %v486
    %v497 = vunpack.c.h.bf16 %v486
    %v498 = vunpack.c.l.bf16 %v487
    %v499 = vunpack.c.h.bf16 %v487
    %v500 = vunpack.c.l.bf16 %v488
    %v501 = vunpack.c.h.bf16 %v488
    %v502 = vunpack.c.l.bf16 %v489
    %v503 = vunpack.c.h.bf16 %v489
    %v504 = vunpack.c.l.bf16 %v490
    %v505 = vunpack.c.h.bf16 %v490
    %v506 = vunpack.c.l.bf16 %v491
    %v507 = vunpack.c.h.bf16 %v491
    %v508 = vld [vmem:[%s6] sm:$0xf]
    %v509 = vld [vmem:[%s5] sm:$0xf]
    %510 = vmatprep.subr.mxu0 0.0
    %511 = vmatpush1.msra.mxu0 %v492
    %512 = vmatprep.subr.mxu0 0.0
    %513 = vmatpush1.msra.mxu0 %v493
    %514 = vmatprep.subr.mxu0 0.0
    %515 = vmatpush1.msra.mxu0 %v494
    %516 = vmatprep.subr.mxu0 0.0
    %517 = vmatpush1.msra.mxu0 %v495
    %518 = vmatprep.subr.mxu0 0.0
    %519 = vmatpush1.msra.mxu0 %v496
    %520 = vmatprep.subr.mxu0 0.0
    %521 = vmatpush1.msra.mxu0 %v497
    %522 = vmatprep.subr.mxu0 0.0
    %523 = vmatpush1.msra.mxu0 %v498
    %524 = vmatprep.subr.mxu0 0.0
    %525 = vmatpush1.msra.mxu0 %v499
    %526 = vmatprep.subr.mxu0 0.0
    %527 = vmatpush1.msra.mxu0 %v500
    %528 = vmatprep.subr.mxu0 0.0
    %529 = vmatpush1.msra.mxu0 %v501
    %530 = vmatprep.subr.mxu0 0.0
    %531 = vmatpush1.msra.mxu0 %v502
    %532 = vmatprep.subr.mxu0 0.0
    %533 = vmatpush1.msra.mxu0 %v503
    %534 = vmatprep.subr.mxu0 0.0
    %535 = vmatpush1.msra.mxu0 %v504
    %536 = vmatprep.subr.mxu0 0.0
    %537 = vmatpush1.msra.mxu0 %v505
    %538 = vmatprep.subr.mxu0 0.0
    %539 = vmatpush1.msra.mxu0 %v506
    %540 = vmatprep.subr.mxu0 0.0
    %541 = vmatpush1.msra.mxu0 %v507
    %542 = vmatprep.subr.mxu0 0.0
    %543 = vmatpush1.msra.mxu0 0.0
    %544 = vmatprep.subr.mxu0 0.0
    %545 = vmatpush1.msra.mxu0 0.0
    %546 = vmatprep.subr.mxu0 0.0
    %547 = vmatpush1.msra.mxu0 0.0
    %548 = vmatprep.subr.mxu0 0.0
    %549 = vmatpush1.msra.mxu0 0.0
    %550 = vmatprep.subr.mxu0 0.0
    %551 = vmatpush1.msra.mxu0 0.0
    %552 = vmatprep.subr.mxu0 0.0
    %553 = vmatpush1.msra.mxu0 0.0
    %554 = vmatprep.subr.mxu0 0.0
    %555 = vmatpush1.msra.mxu0 0.0
    %556 = vmatprep.subr.mxu0 0.0
    %557 = vmatpush1.msra.mxu0 0.0
    %558 = vmatprep.subr.mxu0 0.0
    %559 = vmatpush1.msra.mxu0 0.0
    %560 = vmatprep.subr.mxu0 0.0
    %561 = vmatpush1.msra.mxu0 0.0
    %562 = vmatprep.subr.mxu0 0.0
    %563 = vmatpush1.msra.mxu0 0.0
    %564 = vmatprep.subr.mxu0 0.0
    %565 = vmatpush1.msra.mxu0 0.0
    %566 = vmatprep.subr.mxu0 0.0
    %567 = vmatpush1.msra.mxu0 0.0
    %568 = vmatprep.subr.mxu0 0.0
    %569 = vmatpush1.msra.mxu0 0.0
    %570 = vmatprep.subr.mxu0 0.0
    %571 = vmatpush1.msra.mxu0 0.0
    %572 = vmatprep.subr.mxu0 0.0
    %573 = vmatpush1.msra.mxu0 0.0
    %574 = vmatprep.mubr.f32.mxu0 0.0
    %575 = vmatmul.mubr.f32.gmra.mrb[0].mxu0 %v509
    %v576 = vpop.f32.mrb[0].mxu0
    %v577 = vadd.f32 0.0, %v576
    %v578 = vpop.f32.mrb[0].mxu0
    %579 = vdwg.mxu0
    %v581 = vsel %vm166, %v508, 0
    %583 = vmatprep.subr.mxu0 0.0
    %584 = vmatpush1.msra.mxu0 %v217
    %585 = vmatprep.subr.mxu0 0.0
    %586 = vmatpush1.msra.mxu0 0.0
    %587 = vmatprep.subr.mxu0 0.0
    %588 = vmatpush1.msra.mxu0 0.0
    %589 = vmatprep.subr.mxu0 0.0
    %590 = vmatpush1.msra.mxu0 0.0
    %591 = vmatprep.subr.mxu0 0.0
    %592 = vmatpush1.msra.mxu0 0.0
    %593 = vmatprep.subr.mxu0 0.0
    %594 = vmatpush1.msra.mxu0 0.0
    %595 = vmatprep.subr.mxu0 0.0
    %596 = vmatpush1.msra.mxu0 0.0
    %597 = vmatprep.subr.mxu0 0.0
    %598 = vmatpush1.msra.mxu0 0.0
    %599 = vmatprep.subr.mxu0 0.0
    %600 = vmatpush1.msra.mxu0 0.0
    %601 = vmatprep.subr.mxu0 0.0
    %602 = vmatpush1.msra.mxu0 0.0
    %603 = vmatprep.subr.mxu0 0.0
    %604 = vmatpush1.msra.mxu0 0.0
    %605 = vmatprep.subr.mxu0 0.0
    %606 = vmatpush1.msra.mxu0 0.0
    %607 = vmatprep.subr.mxu0 0.0
    %608 = vmatpush1.msra.mxu0 0.0
    %609 = vmatprep.subr.mxu0 0.0
    %610 = vmatpush1.msra.mxu0 0.0
    %611 = vmatprep.subr.mxu0 0.0
    %612 = vmatpush1.msra.mxu0 0.0
    %613 = vmatprep.subr.mxu0 0.0
    %614 = vmatpush1.msra.mxu0 0.0
    %615 = vmatprep.subr.mxu0 0.0
    %616 = vmatpush1.msra.mxu0 0.0
    %617 = vmatprep.subr.mxu0 0.0
    %618 = vmatpush1.msra.mxu0 0.0
    %619 = vmatprep.subr.mxu0 0.0
    %620 = vmatpush1.msra.mxu0 0.0
    %621 = vmatprep.subr.mxu0 0.0
    %622 = vmatpush1.msra.mxu0 0.0
    %623 = vmatprep.subr.mxu0 0.0
    %624 = vmatpush1.msra.mxu0 0.0
    %625 = vmatprep.subr.mxu0 0.0
    %626 = vmatpush1.msra.mxu0 0.0
    %627 = vmatprep.subr.mxu0 0.0
    %628 = vmatpush1.msra.mxu0 0.0
    %629 = vmatprep.subr.mxu0 0.0
    %630 = vmatpush1.msra.mxu0 0.0
    %631 = vmatprep.subr.mxu0 0.0
    %632 = vmatpush1.msra.mxu0 0.0
    %633 = vmatprep.subr.mxu0 0.0
    %634 = vmatpush1.msra.mxu0 0.0
    %635 = vmatprep.subr.mxu0 0.0
    %636 = vmatpush1.msra.mxu0 0.0
    %637 = vmatprep.subr.mxu0 0.0
    %638 = vmatpush1.msra.mxu0 0.0
    %639 = vmatprep.subr.mxu0 0.0
    %640 = vmatpush1.msra.mxu0 0.0
    %641 = vmatprep.subr.mxu0 0.0
    %642 = vmatpush1.msra.mxu0 0.0
    %643 = vmatprep.subr.mxu0 0.0
    %644 = vmatpush1.msra.mxu0 0.0
    %645 = vmatprep.subr.mxu0 0.0
    %646 = vmatpush1.msra.mxu0 0.0
    %647 = vmatprep.mubr.f32.mxu0 0.0
    %648 = vmatmul.mubr.f32.gmra.mrb[0].mxu0 %v581
    %v649 = vpop.f32.mrb[0].mxu0
    %v650 = vadd.f32 %v577, %v649
    %v651 = vpop.f32.mrb[0].mxu0
    %652 = vdwg.mxu0
    %v653 = vld [vmem:[%s7] sm:$0xf]
    %655 = vset.pattern.permute.xlu0 0
    %656 = vperm.xlu0 %655, %v653
    %v657 = vpop.permute.xlu0 %656
    %v659 = vadd.f32 %v650, %v657
    %vm660 = vcmask 60416
    %661 = vst.msk [vmem:[#allocation2] sm:$0xf] %vm660, %v659
    // Predicated region
    $region34: #{tpu_custom_call.1} parent=1 // pred_check
      _
    $region35: #{tpu_custom_call.1} parent=1 // pred_check_branch
      %663 = sbr.rel (0) target = $region37
    $region36: #{tpu_custom_call.1} parent=1 // pred_region
      %s665 = ssub.s32 64, 64
      %666 = vsyncadd [#allocation3], %s665
      %s668 = sshll.u32 [#allocation2], 4
      %s669 = int_to_ptr.vmem [resolvable:$true] %s668
      %671 = dma.vmem_to_hbm [thread:$0]  %s669, 64, %s8, [#allocation3]
    $region37: #{tpu_custom_call.1} parent=1 // pred_fallthru
      _
    // Predicated region
    $region38: #{tpu_custom_call.1} parent=1 // pred_check
      _
    $region39: #{tpu_custom_call.1} parent=1 // pred_check_branch
      %673 = sbr.rel (0) target = $region41
    $region40: #{tpu_custom_call.1} parent=1 // pred_region
      %674 = dma.done [#allocation3], 64
    $region41: #{tpu_custom_call.1} parent=1 // pred_fallthru
      _
    %675 = vsyncpa [#allocation3], 1

</llo_original>
